<compile_context>
chip_gen: v7x
topology: tpu7x:2x2x1
jax: 0.10.0
libtpu: 0.0.40
codegen_flags: <defaults>
</compile_context>

<pallas_src>
import functools

import jax
import jax.numpy as jnp
from jax.experimental import pallas as pl
from jax.experimental.pallas import tpu as pltpu


# ----------------------------------------------------------------------------
# Tiling helpers
# ----------------------------------------------------------------------------
def _round_up(x: int, m: int) -> int:
    return ((x + m - 1) // m) * m


def _pick_tile(dim: int, target: int, granule: int = 128,
               waste_frac: float = 0.10):
    """Pick (tile, padded_extent) for one lane-aligned dimension.

    Prefers the largest multiple of `granule` <= target that divides
    round_up(dim, granule) exactly (zero extra padding).  Falls back to the
    full `target` tile only if the extra padding it causes stays below
    `waste_frac` of the dimension.
    """
    base = _round_up(dim, granule)
    target = max(granule, (target // granule) * granule)
    if base <= target:
        return base, base                     # a single block covers the dim
    best_div = granule
    for cand in range(target, granule - 1, -granule):
        if base % cand == 0:
            best_div = cand
            break
    if best_div < target:
        padded = _round_up(dim, target)
        if (padded - base) <= waste_frac * base:
            return target, padded
    return best_div, base


# ----------------------------------------------------------------------------
# Kernels
# ----------------------------------------------------------------------------
def _mm_kernel_single_pass(x_ref, w_ref, o_ref):
    """Full-K block: one MXU pass per (tm, tn) output tile."""
    o_ref[...] = jnp.dot(
        x_ref[...], w_ref[...], preferred_element_type=jnp.float32
    ).astype(o_ref.dtype)


def _mm_kernel_k_tiled(x_ref, w_ref, o_ref):
    """K-tiled: accumulate directly into the resident f32 output block."""
    @pl.when(pl.program_id(2) == 0)
    def _init():
        o_ref[...] = jnp.zeros_like(o_ref)

    o_ref[...] += jnp.dot(
        x_ref[...], w_ref[...], preferred_element_type=jnp.float32
    )


# ----------------------------------------------------------------------------
# Wrapper
# ----------------------------------------------------------------------------
def _prepare_weight(w, compute_dtype, tn_target, tk_target):
    """Pad (to tile multiples) + cast the weight once, outside the hot path."""
    K, N = w.shape
    tk, Kp = _pick_tile(K, tk_target)
    tn, Np = _pick_tile(N, tn_target)
    w_p = w
    if (Kp - K) or (Np - N):
        w_p = jnp.pad(w_p, ((0, Kp - K), (0, Np - N)))
    if w_p.dtype != compute_dtype:
        w_p = w_p.astype(compute_dtype)
    return w_p, tn, tk


@functools.partial(
    jax.jit,
    static_argnames=("n_valid", "tn", "tk", "compute_dtype", "tm_target",
                     "k_collapse_bytes"),
)
def _dense_matmul_prepared(x, w_p, *, n_valid, tn, tk, compute_dtype,
                           tm_target, k_collapse_bytes):
    M, K = x.shape
    Kp, Np = w_p.shape
    assert Kp >= K and Kp % 128 == 0 and Np % tn == 0 and Kp % tk == 0

    itemsize = jnp.dtype(compute_dtype).itemsize
    sub = 16 if compute_dtype == jnp.bfloat16 else 8

    tm = min(tm_target, _round_up(M, sub))
    Mp = _round_up(M, tm)

    # Pad / cast the activation only when actually needed.
    x_p = x
    if (Mp - M) or (Kp - K):
        x_p = jnp.pad(x_p, ((0, Mp - M), (0, Kp - K)))
    if x_p.dtype != compute_dtype:
        x_p = x_p.astype(compute_dtype)

    m_blocks, n_blocks = Mp // tm, Np // tn

    # Collapse the K grid axis when the full-K operand slabs (double-buffered)
    # plus the output block comfortably fit in VMEM (true for AGSR-Net Dense).
    collapse_k = (
        2 * (tm * Kp + Kp * tn) * itemsize + 2 * tm * tn * 4 <= k_collapse_bytes
    )

    # Put the grid axis with the most blocks first so the megacore split on
    # v7x actually has >= 2 blocks of work even for skinny activations.
    n_major = n_blocks >= m_blocks

    if collapse_k:
        kernel = _mm_kernel_single_pass
        if n_major:
            grid = (n_blocks, m_blocks)
            x_spec = pl.BlockSpec((tm, Kp), lambda j, i: (i, 0))
            w_spec = pl.BlockSpec((Kp, tn), lambda j, i: (0, j))
            o_spec = pl.BlockSpec((tm, tn), lambda j, i: (i, j))
        else:
            grid = (m_blocks, n_blocks)
            x_spec = pl.BlockSpec((tm, Kp), lambda i, j: (i, 0))
            w_spec = pl.BlockSpec((Kp, tn), lambda i, j: (0, j))
            o_spec = pl.BlockSpec((tm, tn), lambda i, j: (i, j))
        dim_sem = ("parallel", "parallel")
    else:
        kernel = _mm_kernel_k_tiled
        k_blocks = Kp // tk
        if n_major:
            grid = (n_blocks, m_blocks, k_blocks)
            x_spec = pl.BlockSpec((tm, tk), lambda j, i, k: (i, k))
            w_spec = pl.BlockSpec((tk, tn), lambda j, i, k: (k, j))
            o_spec = pl.BlockSpec((tm, tn), lambda j, i, k: (i, j))
        else:
            grid = (m_blocks, n_blocks, k_blocks)
            x_spec = pl.BlockSpec((tm, tk), lambda i, j, k: (i, k))
            w_spec = pl.BlockSpec((tk, tn), lambda i, j, k: (k, j))
            o_spec = pl.BlockSpec((tm, tn), lambda i, j, k: (i, j))
        dim_sem = ("parallel", "parallel", "arbitrary")

    cost = pl.CostEstimate(
        flops=2 * M * K * n_valid,
        transcendentals=0,
        bytes_accessed=(Mp * Kp + Kp * Np) * itemsize + Mp * Np * 4,
    )

    out_p = pl.pallas_call(
        kernel,
        out_shape=jax.ShapeDtypeStruct((Mp, Np), jnp.float32),
        grid_spec=pltpu.PrefetchScalarGridSpec(
            num_scalar_prefetch=0,
            grid=grid,
            in_specs=[x_spec, w_spec],
            out_specs=o_spec,
        ),
        compiler_params=pltpu.CompilerParams(dimension_semantics=dim_sem),
        cost_estimate=cost,
    )(x_p, w_p)

    return out_p[:M, :n_valid]


def dense_matmul(x, w, *, compute_dtype=jnp.bfloat16, tm_target=256,
                 tn_target=512, tk_target=None, k_collapse_bytes=24 << 20):
    """out = x @ w  (torch.mm semantics), tiled Pallas kernel, f32 result."""
    if tk_target is None:
        tk_target = 1024 if compute_dtype == jnp.bfloat16 else 512
    w_p, tn, tk = _prepare_weight(w, compute_dtype, tn_target, tk_target)
    return _dense_matmul_prepared(
        x, w_p, n_valid=w.shape[1], tn=tn, tk=tk,
        compute_dtype=compute_dtype, tm_target=tm_target,
        k_collapse_bytes=k_collapse_bytes)


class Dense:
    """Pallas counterpart of the PyTorch Dense module (out = x @ weights)."""

    def __init__(self, key, n1, n2, mean_dense=0.0, std_dense=0.01, *,
                 compute_dtype=jnp.bfloat16, tm_target=256, tn_target=512,
                 tk_target=None):
        if tk_target is None:
            tk_target = 1024 if compute_dtype == jnp.bfloat16 else 512
        self.n2 = n2
        self.compute_dtype = compute_dtype
        self.tm_target = tm_target
        # Parameter kept in f32 (matches nn.init.normal_ on a FloatTensor).
        self.weights = mean_dense + std_dense * jax.random.normal(
            key, (n1, n2), jnp.float32)
        # Pad + cast the weight ONCE (hoisted out of the per-call path).
        self.w_prepared, self.tn, self.tk = _prepare_weight(
            self.weights, compute_dtype, tn_target, tk_target)

    def __call__(self, x):
        return _dense_matmul_prepared(
            x, self.w_prepared, n_valid=self.n2, tn=self.tn, tk=self.tk,
            compute_dtype=self.compute_dtype, tm_target=self.tm_target,
            k_collapse_bytes=24 << 20)


# ----------------------------------------------------------------------------
# Self-test
# ----------------------------------------------------------------------------
if __name__ == "__main__":
    # Module-consistent small shapes: Dense(n1=32, n2=32), 8 input rows,
    # weights ~ N(mean_dense=0.0, std_dense=0.01).
    n1, n2 = 32, 32
    n_rows = 8
    mean_dense, std_dense = 0.0, 0.01

    key = jax.random.PRNGKey(0)
    kx, kw = jax.random.split(key)
    x = jax.random.normal(kx, (n_rows, n1), dtype=jnp.float32)

    layer = Dense(kw, n1, n2, mean_dense, std_dense)   # bf16 operands (default)
    ref = x @ layer.weights

    out = jax.block_until_ready(layer(x))
    assert out.shape == (n_rows, n2) and out.dtype == jnp.float32
    assert jnp.allclose(out, ref, atol=5e-3, rtol=5e-2)

    # Explicit f32 parity mode.
    out_f32 = jax.block_until_ready(
        dense_matmul(x, layer.weights, compute_dtype=jnp.float32))
    assert out_f32.shape == (n_rows, n2)
    assert jnp.allclose(out_f32, ref, atol=1e-5, rtol=1e-5)

    # Exercise the K-tiled (3-D grid, output-resident accumulator) path.
    kx2, kw2 = jax.random.split(jax.random.PRNGKey(1))
    x2 = jax.random.normal(kx2, (16, 512), jnp.float32)
    w2 = 0.05 * jax.random.normal(kw2, (512, 256), jnp.float32)
    out2 = jax.block_until_ready(
        dense_matmul(x2, w2, compute_dtype=jnp.float32,
                     tk_target=128, k_collapse_bytes=0))
    assert out2.shape == (16, 256)
    assert jnp.allclose(out2, x2 @ w2, atol=1e-2, rtol=1e-2)

    print("KERNEL_OK")
</pallas_src>

<mosaic_0001>
module attributes {stable_mosaic.version = 11 : i64} {
  func.func @_mm_kernel_single_pass(%arg0: i32, %arg1: i32, %arg2: memref<16x128xbf16, #tpu.memory_space<vmem>>, %arg3: memref<128x128xbf16, #tpu.memory_space<vmem>>, %arg4: memref<16x128xf32, #tpu.memory_space<vmem>>) attributes {dimension_semantics = [#tpu.dimension_semantics<parallel>, #tpu.dimension_semantics<parallel>], iteration_bounds = array<i64: 1, 1>, scalar_prefetch = 0 : i64, scratch_operands = 0 : i64, tpu.core_type = #tpu.core_type<tc>, window_params = [{transform_indices = @transform_0, window_bounds = array<i64: 16, 128>}, {transform_indices = @transform_1, window_bounds = array<i64: 128, 128>}, {transform_indices = @transform_2, window_bounds = array<i64: 16, 128>}]} {
    %c0 = arith.constant 0 : index
    %c0_0 = arith.constant 0 : index
    %0 = vector.load %arg2[%c0, %c0_0] : memref<16x128xbf16, #tpu.memory_space<vmem>>, vector<16x128xbf16>
    %c0_1 = arith.constant 0 : index
    %c0_2 = arith.constant 0 : index
    %1 = vector.load %arg3[%c0_1, %c0_2] : memref<128x128xbf16, #tpu.memory_space<vmem>>, vector<128x128xbf16>
    %cst = arith.constant dense<0.000000e+00> : vector<16x128xf32>
    %2 = tpu.matmul %0, %1, %cst {dimension_numbers = #tpu.dot_dimension_numbers<[1], [0], [0], [1], [0, 0, 1, 1], [], []>} : vector<16x128xbf16>, vector<128x128xbf16>, vector<16x128xf32> -> vector<16x128xf32>
    %c0_3 = arith.constant 0 : index
    %c0_4 = arith.constant 0 : index
    %3 = vector.load %arg4[%c0_3, %c0_4] : memref<16x128xf32, #tpu.memory_space<vmem>>, vector<16x128xf32>
    tpu.vector_store %arg4[%c0_3, %c0_4], %2 {strides = array<i32>} : memref<16x128xf32, #tpu.memory_space<vmem>>, vector<16x128xf32>,
    return
  }
  func.func @transform_0(%arg0: i32, %arg1: i32) -> (i32, i32) {
    %c0_i32 = arith.constant 0 : i32
    %c0_i32_0 = arith.constant 0 : i32
    return %arg1, %c0_i32 : i32, i32
  }
  func.func @transform_1(%arg0: i32, %arg1: i32) -> (i32, i32) {
    %c0_i32 = arith.constant 0 : i32
    %c0_i32_0 = arith.constant 0 : i32
    return %c0_i32, %arg0 : i32, i32
  }
  func.func @transform_2(%arg0: i32, %arg1: i32) -> (i32, i32) {
    %c0_i32 = arith.constant 0 : i32
    return %arg1, %arg0 : i32, i32
  }
}

</mosaic_0001>

<llo_original>
// kernel: _dense_matmul_prepared.1
$region0: #{_dense_matmul_prepared.1}
  #allocation0 [shape = 'u32[]', space=smem, size = 0x4, offset = 0x4, fixed_abs, tag = 'smem constant byte address 0x4 - core index']
  #allocation1 [shape = 'u32[144,128]{1,0:T(1,128)}', space=vmem, size = 0x12000, scoped, tag = 'internal scratch']
  %s0 = inlined_call_operand.vmem [shape: bf16[16,128], index: 0, kind: input, shape index: {}]
  %s1 = inlined_call_operand.hbm [shape: bf16[128,128], index: 1, kind: input, shape index: {}]
  %s2 = inlined_call_operand.vmem [shape: f32[16,128], index: 2, kind: output, shape index: {}]
  %s3 = sld [smem:[#allocation0]]
  $region22: #{_dense_matmul_prepared.1} parent=0
    _
  %s5 = ssub.s32 1, %s3
  %s6 = scalar_select 0, %s5, %s3
  $region1: #{_dense_matmul_prepared.1} parent=0
    #allocation2 [shape = 'u8[32768]{0}', space=vmem, size = 0x8000, scoped, tag = 'input window, operand 1, single buffered']
    #allocation3 [shape = 's32[1]{0}', space=sflag, size = 0x4, scoped, tag = 'scoped memory for _dense_matmul_prepared.1']
    %7 = vsyncpa [#allocation3], 0
    // Predicated region
    $region2: #{_dense_matmul_prepared.1} parent=1 // pred_check
      _
    $region3: #{_dense_matmul_prepared.1} parent=1 // pred_check_branch
      %9 = sbr.rel (0) target = $region5
    $region4: #{_dense_matmul_prepared.1} parent=1 // pred_region
      _
    $region5: #{_dense_matmul_prepared.1} parent=1 // pred_fallthru
      _
    // Predicated region
    $region6: #{_dense_matmul_prepared.1} parent=1 // pred_check
      _
    $region7: #{_dense_matmul_prepared.1} parent=1 // pred_check_branch
      %11 = sbr.rel (0) target = $region9
    $region8: #{_dense_matmul_prepared.1} parent=1 // pred_region
      %s13 = ssub.s32 1024, 1024
      %14 = vsyncadd [#allocation3], %s13
      %s15 = sshll.u32 [#allocation2], 4
      %s16 = int_to_ptr.vmem [resolvable:$true] %s15
      %21 = dma.hbm_to_vmem [thread:$0]  %s1, 1024, %s16, [#allocation3], 64, 64, 4
    $region9: #{_dense_matmul_prepared.1} parent=1 // pred_fallthru
      _
    // Predicated region
    $region10: #{_dense_matmul_prepared.1} parent=1 // pred_check
      _
    $region11: #{_dense_matmul_prepared.1} parent=1 // pred_check_branch
      %23 = sbr.rel (0) target = $region13
    $region12: #{_dense_matmul_prepared.1} parent=1 // pred_region
      %24 = dma.done [#allocation3], 1024
    $region13: #{_dense_matmul_prepared.1} parent=1 // pred_fallthru
      _
    %v26 = vld [vmem:[%s0] sm:$0xf]
    %v27 = vld [vmem:[%s0 + $0x4] sm:$0xf]
    %v28 = vld [vmem:[#allocation2] sm:$0xf]
    %v29 = vld [vmem:[#allocation2 + $0x4] sm:$0xf]
    %v30 = vld [vmem:[#allocation2 + $0x8] sm:$0xf]
    %v31 = vld [vmem:[#allocation2 + $0xc] sm:$0xf]
    %v32 = vld [vmem:[#allocation2 + $0x10] sm:$0xf]
    %v33 = vld [vmem:[#allocation2 + $0x14] sm:$0xf]
    %v34 = vld [vmem:[#allocation2 + $0x18] sm:$0xf]
    %v35 = vld [vmem:[#allocation2 + $0x1c] sm:$0xf]
    %v36 = vld [vmem:[#allocation2 + $0x20] sm:$0xf]
    %v37 = vld [vmem:[#allocation2 + $0x24] sm:$0xf]
    %v38 = vld [vmem:[#allocation2 + $0x28] sm:$0xf]
    %v39 = vld [vmem:[#allocation2 + $0x2c] sm:$0xf]
    %v40 = vld [vmem:[#allocation2 + $0x30] sm:$0xf]
    %v41 = vld [vmem:[#allocation2 + $0x34] sm:$0xf]
    %v42 = vld [vmem:[#allocation2 + $0x38] sm:$0xf]
    %v43 = vld [vmem:[#allocation2 + $0x3c] sm:$0xf]
    %v46 = vunpack.c.l.b16 %v26
    %v47 = vunpack.c.l.b16 %v27
    %v48 = vpack.c.b16 %v47, %v46
    %v66 = vunpack.c.l.b16 %v28
    %v67 = vunpack.c.l.b16 %v29
    %v68 = vunpack.c.l.b16 %v30
    %v69 = vunpack.c.l.b16 %v31
    %v70 = vunpack.c.l.b16 %v32
    %v71 = vunpack.c.l.b16 %v33
    %v72 = vunpack.c.l.b16 %v34
    %v73 = vunpack.c.l.b16 %v35
    %v74 = vunpack.c.l.b16 %v36
    %v75 = vunpack.c.l.b16 %v37
    %v76 = vunpack.c.l.b16 %v38
    %v77 = vunpack.c.l.b16 %v39
    %v78 = vunpack.c.l.b16 %v40
    %v79 = vunpack.c.l.b16 %v41
    %v80 = vunpack.c.l.b16 %v42
    %v81 = vunpack.c.l.b16 %v43
    %v82 = vpack.c.b16 %v67, %v66
    %v83 = vpack.c.b16 %v69, %v68
    %v84 = vpack.c.b16 %v71, %v70
    %v85 = vpack.c.b16 %v73, %v72
    %v86 = vpack.c.b16 %v75, %v74
    %v87 = vpack.c.b16 %v77, %v76
    %v88 = vpack.c.b16 %v79, %v78
    %v89 = vpack.c.b16 %v81, %v80
    %98 = vmatprep.subr.bf16.mxu0 0
    %99 = vmatpush1.bf16.msra.mxu0 %v82
    %100 = vmatprep.subr.bf16.mxu0 0
    %101 = vmatpush1.bf16.msra.mxu0 %v83
    %102 = vmatprep.subr.bf16.mxu0 0
    %103 = vmatpush1.bf16.msra.mxu0 %v84
    %104 = vmatprep.subr.bf16.mxu0 0
    %105 = vmatpush1.bf16.msra.mxu0 %v85
    %106 = vmatprep.subr.bf16.mxu0 0
    %107 = vmatpush1.bf16.msra.mxu0 %v86
    %108 = vmatprep.subr.bf16.mxu0 0
    %109 = vmatpush1.bf16.msra.mxu0 %v87
    %110 = vmatprep.subr.bf16.mxu0 0
    %111 = vmatpush1.bf16.msra.mxu0 %v88
    %112 = vmatprep.subr.bf16.mxu0 0
    %113 = vmatpush1.bf16.msra.mxu0 %v89
    %114 = vmatprep.subr.bf16.mxu0 0
    %115 = vmatpush1.bf16.msra.mxu0 0
    %116 = vmatprep.subr.bf16.mxu0 0
    %117 = vmatpush1.bf16.msra.mxu0 0
    %118 = vmatprep.subr.bf16.mxu0 0
    %119 = vmatpush1.bf16.msra.mxu0 0
    %120 = vmatprep.subr.bf16.mxu0 0
    %121 = vmatpush1.bf16.msra.mxu0 0
    %122 = vmatprep.subr.bf16.mxu0 0
    %123 = vmatpush1.bf16.msra.mxu0 0
    %124 = vmatprep.subr.bf16.mxu0 0
    %125 = vmatpush1.bf16.msra.mxu0 0
    %126 = vmatprep.subr.bf16.mxu0 0
    %127 = vmatpush1.bf16.msra.mxu0 0
    %128 = vmatprep.subr.bf16.mxu0 0
    %129 = vmatpush1.bf16.msra.mxu0 0
    %130 = vmatprep.mubr.bf16.mxu0 0
    %131 = vmatmul.mubr.bf16.gmra.mrb[0].mxu0 %v48
    %v132 = vpop.f32.mrb[0].mxu0
    %v133 = vadd.f32 0.0, %v132
    %v134 = vpop.f32.mrb[0].mxu0
    %v135 = vpop.f32.mrb[0].mxu0
    %v136 = vadd.f32 0.0, %v135
    %v137 = vpop.f32.mrb[0].mxu0
    %138 = vdwg.mxu0
    %139 = vst [vmem:[%s2] sm:$0xff] %v133
    %140 = vst [vmem:[%s2 + $0x8] sm:$0xff] %v136
    // Predicated region
    $region14: #{_dense_matmul_prepared.1} parent=1 // pred_check
      _
    $region15: #{_dense_matmul_prepared.1} parent=1 // pred_check_branch
      %142 = sbr.rel (0) target = $region17
    $region16: #{_dense_matmul_prepared.1} parent=1 // pred_region
      _
    $region17: #{_dense_matmul_prepared.1} parent=1 // pred_fallthru
      _
    // Predicated region
    $region18: #{_dense_matmul_prepared.1} parent=1 // pred_check
      _
    $region19: #{_dense_matmul_prepared.1} parent=1 // pred_check_branch
      %144 = sbr.rel (0) target = $region21
    $region20: #{_dense_matmul_prepared.1} parent=1 // pred_region
      _
    $region21: #{_dense_matmul_prepared.1} parent=1 // pred_fallthru
      _
    %145 = vsyncpa [#allocation3], 1

</llo_original>
